<compile_context>
chip_gen: v5e
topology: v5e:2x2
jax: 0.10.0
libtpu: 0.0.40
codegen_flags: <defaults>
</compile_context>

<pallas_src>
import functools

import jax
import jax.numpy as jnp
from jax import lax
from jax.experimental import pallas as pl
from jax.experimental.pallas import tpu as pltpu


def _softq_kernel(obs_ref, w1_ref, b1_ref, w2_ref, b2_ref, w3_ref, b3_ref,
                  out_ref, *, sub_rows):
    """Fused 3-layer MLP: one batch tile per grid step, sub-tiled over rows.

    sub_rows is static; the batch tile (obs_ref.shape[0]) is an exact multiple
    of it.  Each sub-tile keeps h1/h2 ([sub_rows, 256]) inside the vreg file.
    """
    cd = w1_ref.dtype                  # matmul compute dtype (f32 or bf16)
    tb = obs_ref.shape[0]
    n_sub = tb // sub_rows

    # Biases are tiny (<= 2 vregs each); hoist their loads out of the loop.
    b1 = b1_ref[...]
    b2 = b2_ref[...]
    b3 = b3_ref[...]

    def body(i, carry):
        r = pl.multiple_of(i * sub_rows, sub_rows)
        x = obs_ref[pl.ds(r, sub_rows), :]

        # fc1 + ReLU (f32 accumulate, f32 bias/ReLU, then back to compute dtype
        # so the live activation is bf16 on the fast path).
        h1 = jnp.dot(x.astype(cd), w1_ref[...],
                     preferred_element_type=jnp.float32)
        h1 = jnp.maximum(h1 + b1, 0.0).astype(cd)

        # fc2 + ReLU
        h2 = jnp.dot(h1, w2_ref[...], preferred_element_type=jnp.float32)
        h2 = jnp.maximum(h2 + b2, 0.0).astype(cd)

        # fc3 (no activation); output columns padded to 128 lanes, so this is
        # a full, unmasked lane-dense store.
        q = jnp.dot(h2, w3_ref[...], preferred_element_type=jnp.float32)
        out_ref[pl.ds(r, sub_rows), :] = (q + b3).astype(out_ref.dtype)
        return carry

    lax.fori_loop(0, n_sub, body, 0, unroll=True)


def _round_up(x, m):
    return ((x + m - 1) // m) * m


def soft_q_forward(obs, params, *, batch_tile=512, use_bf16_matmul=True):
    """SoftQNetwork forward pass via pallas_call.

    obs:    [B, S] float32
    params: dict with w1 [S,256], b1 [1,256], w2 [256,256], b2 [1,256],
            w3 [256,A], b3 [1,A]   (weights already transposed to [in,out])
    batch_tile:       max rows per grid step (512 default, 1024 also fine --
                      the in-kernel 128-row sub-tile loop contains vreg use).
    use_bf16_matmul:  cast matmul inputs/activations to bf16 (f32 accumulate,
                      f32 bias/ReLU).  Default True (fast path on v5e/v6e/v7x);
                      set False for bit-tight validation.
    returns [B, A] float32 Q-values.
    """
    w1, b1 = params["w1"], params["b1"]
    w2, b2 = params["w2"], params["b2"]
    w3, b3 = params["w3"], params["b3"]

    B, S = obs.shape
    H1 = w1.shape[1]
    H2 = w2.shape[1]
    A = w3.shape[1]

    if use_bf16_matmul:
        # Cast weights once in the wrapper (also halves weight DMA); biases
        # and accumulation stay f32.
        w1 = w1.astype(jnp.bfloat16)
        w2 = w2.astype(jnp.bfloat16)
        w3 = w3.astype(jnp.bfloat16)

    # --- Lane-dense output: pad action dim to the next multiple of 128 -------
    # (and no further: padding past 128 would only add fc3 FLOPs and output
    # HBM writes).  Padded weight/bias columns are zero, so the extra Q
    # columns are exactly zero and sliced off at the end.
    A_pad = _round_up(A, 128)
    if A_pad != A:
        w3 = jnp.pad(w3, ((0, 0), (0, A_pad - A)))
        b3 = jnp.pad(b3, ((0, 0), (0, A_pad - A)))

    # --- Batch tiling ---------------------------------------------------------
    SUB = 128  # rows per in-kernel sub-tile
    if B <= SUB:
        # Small batch: one grid step, one sub-tile, rounded to the sublane (8).
        tb = max(8, _round_up(B, 8))
        sub = tb
    else:
        # Large batch: tile in multiples of 128 rows, up to batch_tile rows per
        # step, but keep the grid >= 2 steps so both v7x TensorCores get work
        # (dimension_semantics=("parallel",)); harmless on single-TC v5e/v6e.
        nblk = pl.cdiv(B, SUB)
        bps = max(1, min(max(batch_tile, SUB) // SUB, pl.cdiv(nblk, 2)))
        tb = bps * SUB
        sub = SUB

    B_pad = pl.cdiv(B, tb) * tb
    if B_pad != B:
        # Only copies obs when B is ragged w.r.t. the tile; keep B a multiple
        # of the tile in the data loader to avoid this extra HBM copy.  Pad
        # rows produce garbage Q rows that are discarded by the final slice.
        obs = jnp.pad(obs, ((0, B_pad - B), (0, 0)))

    grid = (B_pad // tb,)
    kernel = functools.partial(_softq_kernel, sub_rows=sub)

    out = pl.pallas_call(
        kernel,
        out_shape=jax.ShapeDtypeStruct((B_pad, A_pad), jnp.float32),
        grid_spec=pltpu.PrefetchScalarGridSpec(
            num_scalar_prefetch=0,
            grid=grid,
            in_specs=[
                # obs: tiled over the batch axis.
                pl.BlockSpec((tb, S), lambda i: (i, 0)),
                # weights / biases: whole array resident every step (~200 KB).
                pl.BlockSpec((S, H1), lambda i: (0, 0)),
                pl.BlockSpec((1, H1), lambda i: (0, 0)),
                pl.BlockSpec((H1, H2), lambda i: (0, 0)),
                pl.BlockSpec((1, H2), lambda i: (0, 0)),
                pl.BlockSpec((H2, A_pad), lambda i: (0, 0)),
                pl.BlockSpec((1, A_pad), lambda i: (0, 0)),
            ],
            out_specs=pl.BlockSpec((tb, A_pad), lambda i: (i, 0)),
        ),
        compiler_params=pltpu.CompilerParams(
            dimension_semantics=("parallel",)),
    )(obs, w1, b1, w2, b2, w3, b3)

    return out[:B, :A]


def init_params(key, state_dim, action_dim, hidden=256):
    """Deterministic parameter init (PyTorch-Linear-like uniform fan-in)."""
    def linear(k, fan_in, fan_out):
        kw, kb = jax.random.split(k)
        bound = 1.0 / jnp.sqrt(jnp.float32(fan_in))
        # stored as [in, out] (transposed vs. PyTorch's [out, in])
        w = jax.random.uniform(kw, (fan_in, fan_out), jnp.float32,
                               minval=-bound, maxval=bound)
        b = jax.random.uniform(kb, (1, fan_out), jnp.float32,
                               minval=-bound, maxval=bound)
        return w, b

    k1, k2, k3 = jax.random.split(key, 3)
    w1, b1 = linear(k1, state_dim, hidden)
    w2, b2 = linear(k2, hidden, hidden)
    w3, b3 = linear(k3, hidden, action_dim)
    return {"w1": w1, "b1": b1, "w2": w2, "b2": b2, "w3": w3, "b3": b3}


def reference_forward(obs, p):
    """Pure-JAX reference of the PyTorch forward pass."""
    h1 = jnp.maximum(obs @ p["w1"] + p["b1"], 0.0)
    h2 = jnp.maximum(h1 @ p["w2"] + p["b2"], 0.0)
    return h2 @ p["w3"] + p["b3"]


if __name__ == "__main__":
    key = jax.random.PRNGKey(0)
    k_obs, k_obs2, k_params = jax.random.split(key, 3)

    # Small shapes consistent with the module: state_shape=(16,), action_shape=6
    batch, state_dim, action_dim = 8, 16, 6
    obs = jax.random.normal(k_obs, (batch, state_dim), jnp.float32)
    params = init_params(k_params, state_dim, action_dim)
    q_small_ref = reference_forward(obs, params)

    # 1) Default fast path (bf16 MXU inputs), small batch / single tile.
    q = jax.block_until_ready(soft_q_forward(obs, params))
    assert q.shape == (batch, action_dim)
    assert jnp.allclose(q, q_small_ref, atol=1e-1, rtol=1e-1)

    # 2) f32 path — bit-tight validation against the reference.
    q32 = jax.block_until_ready(
        soft_q_forward(obs, params, use_bf16_matmul=False))
    assert jnp.allclose(q32, q_small_ref, atol=1e-5, rtol=1e-5)

    # 3) Larger ragged batch — exercises the multi-step grid (>=2 steps for
    #    v7x megacore), batch padding, the in-kernel sub-tile loop, and the
    #    lane-padded output slice.
    batch2 = 300
    obs2 = jax.random.normal(k_obs2, (batch2, state_dim), jnp.float32)
    q2_ref = reference_forward(obs2, params)

    q2 = jax.block_until_ready(
        soft_q_forward(obs2, params, use_bf16_matmul=False))
    assert q2.shape == (batch2, action_dim)
    assert jnp.allclose(q2, q2_ref, atol=1e-5, rtol=1e-5)

    q2b = jax.block_until_ready(soft_q_forward(obs2, params))  # bf16 default
    assert q2b.shape == (batch2, action_dim)
    assert bool(jnp.all(jnp.isfinite(q2b)))
    assert jnp.allclose(q2b, q2_ref, atol=1e-1, rtol=1e-1)

    print("KERNEL_OK")
</pallas_src>

<mosaic_0001>
module attributes {stable_mosaic.version = 11 : i64} {
  func.func @_softq_kernel(%arg0: i32, %arg1: memref<8x16xf32, #tpu.memory_space<vmem>>, %arg2: memref<16x256xbf16, #tpu.memory_space<vmem>>, %arg3: memref<1x256xf32, #tpu.memory_space<vmem>>, %arg4: memref<256x256xbf16, #tpu.memory_space<vmem>>, %arg5: memref<1x256xf32, #tpu.memory_space<vmem>>, %arg6: memref<256x128xbf16, #tpu.memory_space<vmem>>, %arg7: memref<1x128xf32, #tpu.memory_space<vmem>>, %arg8: memref<8x128xf32, #tpu.memory_space<vmem>>) attributes {dimension_semantics = [#tpu.dimension_semantics<parallel>], iteration_bounds = array<i64: 1>, scalar_prefetch = 0 : i64, scratch_operands = 0 : i64, tpu.core_type = #tpu.core_type<tc>, window_params = [{transform_indices = @transform_0, window_bounds = array<i64: 8, 16>}, {pipeline_mode = #tpu.pipeline_mode<synchronous>, transform_indices = @transform_1, window_bounds = array<i64: 16, 256>}, {pipeline_mode = #tpu.pipeline_mode<synchronous>, transform_indices = @transform_2, window_bounds = array<i64: 1, 256>}, {pipeline_mode = #tpu.pipeline_mode<synchronous>, transform_indices = @transform_3, window_bounds = array<i64: 256, 256>}, {pipeline_mode = #tpu.pipeline_mode<synchronous>, transform_indices = @transform_4, window_bounds = array<i64: 1, 256>}, {pipeline_mode = #tpu.pipeline_mode<synchronous>, transform_indices = @transform_5, window_bounds = array<i64: 256, 128>}, {pipeline_mode = #tpu.pipeline_mode<synchronous>, transform_indices = @transform_6, window_bounds = array<i64: 1, 128>}, {transform_indices = @transform_7, window_bounds = array<i64: 8, 128>}]} {
    %c0 = arith.constant 0 : index
    %c0_0 = arith.constant 0 : index
    %0 = vector.load %arg3[%c0, %c0_0] : memref<1x256xf32, #tpu.memory_space<vmem>>, vector<1x256xf32>
    %c0_1 = arith.constant 0 : index
    %c0_2 = arith.constant 0 : index
    %1 = vector.load %arg5[%c0_1, %c0_2] : memref<1x256xf32, #tpu.memory_space<vmem>>, vector<1x256xf32>
    %c0_3 = arith.constant 0 : index
    %c0_4 = arith.constant 0 : index
    %2 = vector.load %arg7[%c0_3, %c0_4] : memref<1x128xf32, #tpu.memory_space<vmem>>, vector<1x128xf32>
    %c0_i32 = arith.constant 0 : i32
    %c8_i32 = arith.constant 8 : i32
    %3 = arith.muli %c0_i32, %c8_i32 : i32
    %4 = tpu.assume_multiple %3, 8 : i32
    %5 = arith.index_cast %4 : i32 to index
    %c0_5 = arith.constant 0 : index
    %6 = vector.load %arg1[%5, %c0_5] : memref<8x16xf32, #tpu.memory_space<vmem>>, vector<8x16xf32>
    %7 = arith.truncf %6 : vector<8x16xf32> to vector<8x16xbf16>
    %c0_6 = arith.constant 0 : index
    %c0_7 = arith.constant 0 : index
    %8 = vector.load %arg2[%c0_6, %c0_7] : memref<16x256xbf16, #tpu.memory_space<vmem>>, vector<16x256xbf16>
    %cst = arith.constant dense<0.000000e+00> : vector<8x256xf32>
    %9 = tpu.matmul %7, %8, %cst {dimension_numbers = #tpu.dot_dimension_numbers<[1], [0], [0], [1], [0, 0, 1, 1], [], []>} : vector<8x16xbf16>, vector<16x256xbf16>, vector<8x256xf32> -> vector<8x256xf32>
    %10 = vector.broadcast %0 : vector<1x256xf32> to vector<8x256xf32>
    %11 = arith.addf %9, %10 : vector<8x256xf32>
    %cst_8 = arith.constant 0.000000e+00 : f32
    %12 = vector.broadcast %cst_8 : f32 to vector<8x256xf32>
    %13 = arith.maximumf %11, %12 : vector<8x256xf32>
    %14 = arith.truncf %13 : vector<8x256xf32> to vector<8x256xbf16>
    %c0_9 = arith.constant 0 : index
    %c0_10 = arith.constant 0 : index
    %15 = vector.load %arg4[%c0_9, %c0_10] : memref<256x256xbf16, #tpu.memory_space<vmem>>, vector<256x256xbf16>
    %cst_11 = arith.constant dense<0.000000e+00> : vector<8x256xf32>
    %16 = tpu.matmul %14, %15, %cst_11 {dimension_numbers = #tpu.dot_dimension_numbers<[1], [0], [0], [1], [0, 0, 1, 1], [], []>} : vector<8x256xbf16>, vector<256x256xbf16>, vector<8x256xf32> -> vector<8x256xf32>
    %17 = vector.broadcast %1 : vector<1x256xf32> to vector<8x256xf32>
    %18 = arith.addf %16, %17 : vector<8x256xf32>
    %cst_12 = arith.constant 0.000000e+00 : f32
    %19 = vector.broadcast %cst_12 : f32 to vector<8x256xf32>
    %20 = arith.maximumf %18, %19 : vector<8x256xf32>
    %21 = arith.truncf %20 : vector<8x256xf32> to vector<8x256xbf16>
    %c0_13 = arith.constant 0 : index
    %c0_14 = arith.constant 0 : index
    %22 = vector.load %arg6[%c0_13, %c0_14] : memref<256x128xbf16, #tpu.memory_space<vmem>>, vector<256x128xbf16>
    %cst_15 = arith.constant dense<0.000000e+00> : vector<8x128xf32>
    %23 = tpu.matmul %21, %22, %cst_15 {dimension_numbers = #tpu.dot_dimension_numbers<[1], [0], [0], [1], [0, 0, 1, 1], [], []>} : vector<8x256xbf16>, vector<256x128xbf16>, vector<8x128xf32> -> vector<8x128xf32>
    %24 = vector.broadcast %2 : vector<1x128xf32> to vector<8x128xf32>
    %25 = arith.addf %23, %24 : vector<8x128xf32>
    %26 = arith.index_cast %4 : i32 to index
    %c0_16 = arith.constant 0 : index
    %27 = vector.load %arg8[%26, %c0_16] : memref<8x128xf32, #tpu.memory_space<vmem>>, vector<8x128xf32>
    tpu.vector_store %arg8[%26, %c0_16], %25 {strides = array<i32>} : memref<8x128xf32, #tpu.memory_space<vmem>>, vector<8x128xf32>,
    %c1_i32 = arith.constant 1 : i32
    return
  }
  func.func @transform_0(%arg0: i32) -> (i32, i32) {
    %c0_i32 = arith.constant 0 : i32
    %c0_i32_0 = arith.constant 0 : i32
    return %arg0, %c0_i32 : i32, i32
  }
  func.func @transform_1(%arg0: i32) -> (i32, i32) {
    %c0_i32 = arith.constant 0 : i32
    %c0_i32_0 = arith.constant 0 : i32
    %c0_i32_1 = arith.constant 0 : i32
    return %c0_i32, %c0_i32_0 : i32, i32
  }
  func.func @transform_2(%arg0: i32) -> (i32, i32) {
    %c0_i32 = arith.constant 0 : i32
    %c0_i32_0 = arith.constant 0 : i32
    %c0_i32_1 = arith.constant 0 : i32
    return %c0_i32, %c0_i32_0 : i32, i32
  }
  func.func @transform_3(%arg0: i32) -> (i32, i32) {
    %c0_i32 = arith.constant 0 : i32
    %c0_i32_0 = arith.constant 0 : i32
    %c0_i32_1 = arith.constant 0 : i32
    return %c0_i32, %c0_i32_0 : i32, i32
  }
  func.func @transform_4(%arg0: i32) -> (i32, i32) {
    %c0_i32 = arith.constant 0 : i32
    %c0_i32_0 = arith.constant 0 : i32
    %c0_i32_1 = arith.constant 0 : i32
    return %c0_i32, %c0_i32_0 : i32, i32
  }
  func.func @transform_5(%arg0: i32) -> (i32, i32) {
    %c0_i32 = arith.constant 0 : i32
    %c0_i32_0 = arith.constant 0 : i32
    %c0_i32_1 = arith.constant 0 : i32
    return %c0_i32, %c0_i32_0 : i32, i32
  }
  func.func @transform_6(%arg0: i32) -> (i32, i32) {
    %c0_i32 = arith.constant 0 : i32
    %c0_i32_0 = arith.constant 0 : i32
    %c0_i32_1 = arith.constant 0 : i32
    return %c0_i32, %c0_i32_0 : i32, i32
  }
  func.func @transform_7(%arg0: i32) -> (i32, i32) {
    %c0_i32 = arith.constant 0 : i32
    %c0_i32_0 = arith.constant 0 : i32
    return %arg0, %c0_i32 : i32, i32
  }
}

</mosaic_0001>

<llo_original>
// kernel: tpu_custom_call.1
$region0: #{tpu_custom_call.1}
  #allocation0 [shape = 'u32[]', space=smem, size = 0x4, offset = 0x4, fixed_abs, tag = 'smem constant byte address 0x4 - core index']
  #allocation1 [shape = 'u32[72,128]{1,0:T(1,128)}', space=vmem, size = 0x9000, scoped, tag = 'internal scratch']
  %s0 = inlined_call_operand.hbm [shape: f32[8,16], index: 0, kind: input, shape index: {}]
  %s1 = inlined_call_operand.hbm [shape: bf16[16,256], index: 1, kind: input, shape index: {}]
  %s2 = inlined_call_operand.hbm [shape: f32[1,256], index: 2, kind: input, shape index: {}]
  %s3 = inlined_call_operand.hbm [shape: bf16[256,256], index: 3, kind: input, shape index: {}]
  %s4 = inlined_call_operand.vmem [shape: f32[1,256], index: 4, kind: input, shape index: {}]
  %s5 = inlined_call_operand.hbm [shape: bf16[256,128], index: 5, kind: input, shape index: {}]
  %s6 = inlined_call_operand.vmem [shape: f32[1,128], index: 6, kind: input, shape index: {}]
  %s7 = inlined_call_operand.hbm [shape: f32[8,128], index: 7, kind: output, shape index: {}]
  %s8 = sld [smem:[#allocation0]]
  $region58: #{tpu_custom_call.1} parent=0
    _
  %s10 = ssub.s32 1, %s8
  %s11 = scalar_select 0, %s10, %s8
  $region1: #{tpu_custom_call.1} parent=0
    #allocation2 [shape = 'u8[4096]{0}', space=vmem, size = 0x1000, scoped, tag = 'input window, operand 0, single buffered']
    #allocation3 [shape = 's32[1]{0}', space=sflag, size = 0x4, scoped, tag = 'scoped memory for tpu_custom_call.1']
    #allocation4 [shape = 's32[1]{0}', space=sflag, size = 0x4, scoped, tag = 'scoped memory for tpu_custom_call.1']
    #allocation5 [shape = 'u8[8192]{0}', space=vmem, size = 0x2000, scoped, tag = 'input window, operand 1, single buffered']
    #allocation6 [shape = 's32[1]{0}', space=sflag, size = 0x4, scoped, tag = 'scoped memory for tpu_custom_call.1']
    #allocation7 [shape = 'u8[1024]{0}', space=vmem, size = 0x400, scoped, tag = 'input window, operand 2, single buffered']
    #allocation8 [shape = 'u8[131072]{0}', space=vmem, size = 0x20000, scoped, tag = 'input window, operand 3, single buffered']
    #allocation9 [shape = 's32[1]{0}', space=sflag, size = 0x4, scoped, tag = 'scoped memory for tpu_custom_call.1']
    #allocation10 [shape = 'u8[65536]{0}', space=vmem, size = 0x10000, scoped, tag = 'input window, operand 5, single buffered']
    #allocation11 [shape = 'u8[4096]{0}', space=vmem, size = 0x1000, scoped, tag = 'output window, operand 0, single buffered']
    %12 = vsyncpa [#allocation3], 0
    %13 = vsyncpa [#allocation6], 0
    %14 = vsyncpa [#allocation9], 0
    %15 = vsyncpa [#allocation4], 0
    // Predicated region
    $region2: #{tpu_custom_call.1} parent=1 // pred_check
      _
    $region3: #{tpu_custom_call.1} parent=1 // pred_check_branch
      %17 = sbr.rel (0) target = $region5
    $region4: #{tpu_custom_call.1} parent=1 // pred_region
      %19 = vsyncadd [#allocation3], 0
      %s21 = sshll.u32 %s0, 4
      %s22 = int_to_ptr.hbm [resolvable:$true] %s21
      %s23 = sshll.u32 [#allocation2], 4
      %s24 = int_to_ptr.vmem [resolvable:$true] %s23
      %26 = dma.hbm_to_vmem [thread:$0]  %s22, 128, %s24, [#allocation3]
    $region5: #{tpu_custom_call.1} parent=1 // pred_fallthru
      _
    // Predicated region
    $region6: #{tpu_custom_call.1} parent=1 // pred_check
      _
    $region7: #{tpu_custom_call.1} parent=1 // pred_check_branch
      %28 = sbr.rel (0) target = $region9
    $region8: #{tpu_custom_call.1} parent=1 // pred_region
      %30 = vsyncadd [#allocation6], 0
      %s31 = sshll.u32 %s1, 4
      %s32 = int_to_ptr.hbm [resolvable:$true] %s31
      %s33 = sshll.u32 [#allocation5], 4
      %s34 = int_to_ptr.vmem [resolvable:$true] %s33
      %39 = dma.hbm_to_vmem [thread:$0]  %s32, 256, %s34, [#allocation6], 128, 128, 8
    $region9: #{tpu_custom_call.1} parent=1 // pred_fallthru
      _
    // Predicated region
    $region10: #{tpu_custom_call.1} parent=1 // pred_check
      _
    $region11: #{tpu_custom_call.1} parent=1 // pred_check_branch
      %41 = sbr.rel (0) target = $region13
    $region12: #{tpu_custom_call.1} parent=1 // pred_region
      %43 = vsyncadd [#allocation6], 0
      %s45 = sshll.u32 %s2, 4
      %s46 = int_to_ptr.hbm [resolvable:$true] %s45
      %s47 = sshll.u32 [#allocation7], 4
      %s48 = int_to_ptr.vmem [resolvable:$true] %s47
      %50 = dma.hbm_to_vmem [thread:$0]  %s46, 32, %s48, [#allocation6]
    $region13: #{tpu_custom_call.1} parent=1 // pred_fallthru
      _
    // Predicated region
    $region14: #{tpu_custom_call.1} parent=1 // pred_check
      _
    $region15: #{tpu_custom_call.1} parent=1 // pred_check_branch
      %52 = sbr.rel (0) target = $region17
    $region16: #{tpu_custom_call.1} parent=1 // pred_region
      %54 = vsyncadd [#allocation9], 0
      %s55 = sshll.u32 %s3, 4
      %s56 = int_to_ptr.hbm [resolvable:$true] %s55
      %s57 = sshll.u32 [#allocation8], 4
      %s58 = int_to_ptr.vmem [resolvable:$true] %s57
      %63 = dma.hbm_to_vmem [thread:$0]  %s56, 4096, %s58, [#allocation9], 128, 128, 8
    $region17: #{tpu_custom_call.1} parent=1 // pred_fallthru
      _
    // Predicated region
    $region18: #{tpu_custom_call.1} parent=1 // pred_check
      _
    $region19: #{tpu_custom_call.1} parent=1 // pred_check_branch
      %65 = sbr.rel (0) target = $region21
    $region20: #{tpu_custom_call.1} parent=1 // pred_region
      _
    $region21: #{tpu_custom_call.1} parent=1 // pred_fallthru
      _
    // Predicated region
    $region22: #{tpu_custom_call.1} parent=1 // pred_check
      _
    $region23: #{tpu_custom_call.1} parent=1 // pred_check_branch
      %67 = sbr.rel (0) target = $region25
    $region24: #{tpu_custom_call.1} parent=1 // pred_region
      %69 = vsyncadd [#allocation9], 0
      %s70 = sshll.u32 %s5, 4
      %s71 = int_to_ptr.hbm [resolvable:$true] %s70
      %s72 = sshll.u32 [#allocation10], 4
      %s73 = int_to_ptr.vmem [resolvable:$true] %s72
      %78 = dma.hbm_to_vmem [thread:$0]  %s71, 2048, %s73, [#allocation9], 64, 64, 4
    $region25: #{tpu_custom_call.1} parent=1 // pred_fallthru
      _
    // Predicated region
    $region26: #{tpu_custom_call.1} parent=1 // pred_check
      _
    $region27: #{tpu_custom_call.1} parent=1 // pred_check_branch
      %80 = sbr.rel (0) target = $region29
    $region28: #{tpu_custom_call.1} parent=1 // pred_region
      _
    $region29: #{tpu_custom_call.1} parent=1 // pred_fallthru
      _
    // Predicated region
    $region30: #{tpu_custom_call.1} parent=1 // pred_check
      _
    $region31: #{tpu_custom_call.1} parent=1 // pred_check_branch
      %82 = sbr.rel (0) target = $region33
    $region32: #{tpu_custom_call.1} parent=1 // pred_region
      %84 = dma.done [#allocation3], 128
    $region33: #{tpu_custom_call.1} parent=1 // pred_fallthru
      _
    // Predicated region
    $region34: #{tpu_custom_call.1} parent=1 // pred_check
      _
    $region35: #{tpu_custom_call.1} parent=1 // pred_check_branch
      %86 = sbr.rel (0) target = $region37
    $region36: #{tpu_custom_call.1} parent=1 // pred_region
      %88 = dma.done [#allocation6], 256
    $region37: #{tpu_custom_call.1} parent=1 // pred_fallthru
      _
    // Predicated region
    $region38: #{tpu_custom_call.1} parent=1 // pred_check
      _
    $region39: #{tpu_custom_call.1} parent=1 // pred_check_branch
      %90 = sbr.rel (0) target = $region41
    $region40: #{tpu_custom_call.1} parent=1 // pred_region
      %92 = dma.done [#allocation6], 32
    $region41: #{tpu_custom_call.1} parent=1 // pred_fallthru
      _
    // Predicated region
    $region42: #{tpu_custom_call.1} parent=1 // pred_check
      _
    $region43: #{tpu_custom_call.1} parent=1 // pred_check_branch
      %94 = sbr.rel (0) target = $region45
    $region44: #{tpu_custom_call.1} parent=1 // pred_region
      %96 = dma.done [#allocation9], 4096
    $region45: #{tpu_custom_call.1} parent=1 // pred_fallthru
      _
    // Predicated region
    $region46: #{tpu_custom_call.1} parent=1 // pred_check
      _
    $region47: #{tpu_custom_call.1} parent=1 // pred_check_branch
      %98 = sbr.rel (0) target = $region49
    $region48: #{tpu_custom_call.1} parent=1 // pred_region
      %100 = dma.done [#allocation9], 2048
    $region49: #{tpu_custom_call.1} parent=1 // pred_fallthru
      _
    %v102 = vld [vmem:[#allocation7] sm:$0x3]
    %v103 = vld [vmem:[%s4] sm:$0x3]
    %v104 = vld [vmem:[%s6] sm:$0x1]
    %v105 = vld [vmem:[#allocation2] sm:$0xff]
    %v106 = vpack.c.bf16 %v105, %v105
    %v107 = vld [vmem:[#allocation5] sm:$0xff]
    %v108 = vld [vmem:[#allocation5 + $0x8] sm:$0xff]
    %v110 = vperm.slane %v102, 0
    %v111 = vperm.slane %v102, 1
    %v116 = vunpack.c.l.b16 %v107
    %v117 = vunpack.c.h.b16 %v107
    %v118 = vunpack.c.l.b16 %v108
    %v119 = vunpack.c.h.b16 %v108
    %v120 = vpack.c.b16 %v118, %v116
    %v121 = vpack.c.b16 %v119, %v117
    %vm124 = vcmask 130048
    %v126 = vsel %vm124, %v106, 0
    %128 = vmatpush.bf16.msra.mxu0 0
    %129 = vmatpush.bf16.msra.mxu0 0
    %130 = vmatpush.bf16.msra.mxu0 0
    %131 = vmatpush.bf16.msra.mxu0 0
    %132 = vmatpush.bf16.msra.mxu0 0
    %133 = vmatpush.bf16.msra.mxu0 0
    %134 = vmatpush.bf16.msra.mxu0 0
    %135 = vmatpush.bf16.msra.mxu0 %v120
    %136 = vmatmul.bf16.gmra.mxu0 %v126
    %v137 = vpop.f32.mrf.mxu0
    %v138 = vadd.f32 %v110, %v137
    %v139 = vpop.f32.mrf.mxu0
    %140 = vdwg.mxu0
    %141 = vmatpush.bf16.msra.mxu0 0
    %142 = vmatpush.bf16.msra.mxu0 0
    %143 = vmatpush.bf16.msra.mxu0 0
    %144 = vmatpush.bf16.msra.mxu0 0
    %145 = vmatpush.bf16.msra.mxu0 0
    %146 = vmatpush.bf16.msra.mxu0 0
    %147 = vmatpush.bf16.msra.mxu0 0
    %148 = vmatpush.bf16.msra.mxu0 %v121
    %149 = vmatmul.bf16.gmra.mxu0 %v126
    %v150 = vpop.f32.mrf.mxu0
    %v151 = vadd.f32 %v111, %v150
    %v152 = vpop.f32.mrf.mxu0
    %153 = vdwg.mxu0
    %v154 = vmax.f32 %v138, 0.0
    %v155 = vmax.f32 %v151, 0.0
    %v156 = vpack.c.bf16 %v154, %v154
    %v157 = vpack.c.bf16 %v155, %v155
    %v158 = vld [vmem:[#allocation8] sm:$0xff]
    %v159 = vld [vmem:[#allocation8 + $0x8] sm:$0xff]
    %v160 = vld [vmem:[#allocation8 + $0x10] sm:$0xff]
    %v161 = vld [vmem:[#allocation8 + $0x18] sm:$0xff]
    %v162 = vld [vmem:[#allocation8 + $0x20] sm:$0xff]
    %v163 = vld [vmem:[#allocation8 + $0x28] sm:$0xff]
    %v164 = vld [vmem:[#allocation8 + $0x30] sm:$0xff]
    %v165 = vld [vmem:[#allocation8 + $0x38] sm:$0xff]
    %v166 = vld [vmem:[#allocation8 + $0x40] sm:$0xff]
    %v167 = vld [vmem:[#allocation8 + $0x48] sm:$0xff]
    %v168 = vld [vmem:[#allocation8 + $0x50] sm:$0xff]
    %v169 = vld [vmem:[#allocation8 + $0x58] sm:$0xff]
    %v170 = vld [vmem:[#allocation8 + $0x60] sm:$0xff]
    %v171 = vld [vmem:[#allocation8 + $0x68] sm:$0xff]
    %v172 = vld [vmem:[#allocation8 + $0x70] sm:$0xff]
    %v173 = vld [vmem:[#allocation8 + $0x78] sm:$0xff]
    %v174 = vld [vmem:[#allocation8 + $0x80] sm:$0xff]
    %v175 = vld [vmem:[#allocation8 + $0x88] sm:$0xff]
    %v176 = vld [vmem:[#allocation8 + $0x90] sm:$0xff]
    %v177 = vld [vmem:[#allocation8 + $0x98] sm:$0xff]
    %v178 = vld [vmem:[#allocation8 + $0xa0] sm:$0xff]
    %v179 = vld [vmem:[#allocation8 + $0xa8] sm:$0xff]
    %v180 = vld [vmem:[#allocation8 + $0xb0] sm:$0xff]
    %v181 = vld [vmem:[#allocation8 + $0xb8] sm:$0xff]
    %v182 = vld [vmem:[#allocation8 + $0xc0] sm:$0xff]
    %v183 = vld [vmem:[#allocation8 + $0xc8] sm:$0xff]
    %v184 = vld [vmem:[#allocation8 + $0xd0] sm:$0xff]
    %v185 = vld [vmem:[#allocation8 + $0xd8] sm:$0xff]
    %v186 = vld [vmem:[#allocation8 + $0xe0] sm:$0xff]
    %v187 = vld [vmem:[#allocation8 + $0xe8] sm:$0xff]
    %v188 = vld [vmem:[#allocation8 + $0xf0] sm:$0xff]
    %v189 = vld [vmem:[#allocation8 + $0xf8] sm:$0xff]
    %v191 = vperm.slane %v103, 0
    %v192 = vperm.slane %v103, 1
    %v227 = vunpack.c.l.b16 %v158
    %v228 = vunpack.c.h.b16 %v158
    %v229 = vunpack.c.l.b16 %v159
    %v230 = vunpack.c.h.b16 %v159
    %v231 = vunpack.c.l.b16 %v160
    %v232 = vunpack.c.h.b16 %v160
    %v233 = vunpack.c.l.b16 %v161
    %v234 = vunpack.c.h.b16 %v161
    %v235 = vunpack.c.l.b16 %v162
    %v236 = vunpack.c.h.b16 %v162
    %v237 = vunpack.c.l.b16 %v163
    %v238 = vunpack.c.h.b16 %v163
    %v239 = vunpack.c.l.b16 %v164
    %v240 = vunpack.c.h.b16 %v164
    %v241 = vunpack.c.l.b16 %v165
    %v242 = vunpack.c.h.b16 %v165
    %v243 = vunpack.c.l.b16 %v166
    %v244 = vunpack.c.h.b16 %v166
    %v245 = vunpack.c.l.b16 %v167
    %v246 = vunpack.c.h.b16 %v167
    %v247 = vunpack.c.l.b16 %v168
    %v248 = vunpack.c.h.b16 %v168
    %v249 = vunpack.c.l.b16 %v169
    %v250 = vunpack.c.h.b16 %v169
    %v251 = vunpack.c.l.b16 %v170
    %v252 = vunpack.c.h.b16 %v170
    %v253 = vunpack.c.l.b16 %v171
    %v254 = vunpack.c.h.b16 %v171
    %v255 = vunpack.c.l.b16 %v172
    %v256 = vunpack.c.h.b16 %v172
    %v257 = vunpack.c.l.b16 %v173
    %v258 = vunpack.c.h.b16 %v173
    %v259 = vunpack.c.l.b16 %v174
    %v260 = vunpack.c.h.b16 %v174
    %v261 = vunpack.c.l.b16 %v175
    %v262 = vunpack.c.h.b16 %v175
    %v263 = vunpack.c.l.b16 %v176
    %v264 = vunpack.c.h.b16 %v176
    %v265 = vunpack.c.l.b16 %v177
    %v266 = vunpack.c.h.b16 %v177
    %v267 = vunpack.c.l.b16 %v178
    %v268 = vunpack.c.h.b16 %v178
    %v269 = vunpack.c.l.b16 %v179
    %v270 = vunpack.c.h.b16 %v179
    %v271 = vunpack.c.l.b16 %v180
    %v272 = vunpack.c.h.b16 %v180
    %v273 = vunpack.c.l.b16 %v181
    %v274 = vunpack.c.h.b16 %v181
    %v275 = vunpack.c.l.b16 %v182
    %v276 = vunpack.c.h.b16 %v182
    %v277 = vunpack.c.l.b16 %v183
    %v278 = vunpack.c.h.b16 %v183
    %v279 = vunpack.c.l.b16 %v184
    %v280 = vunpack.c.h.b16 %v184
    %v281 = vunpack.c.l.b16 %v185
    %v282 = vunpack.c.h.b16 %v185
    %v283 = vunpack.c.l.b16 %v186
    %v284 = vunpack.c.h.b16 %v186
    %v285 = vunpack.c.l.b16 %v187
    %v286 = vunpack.c.h.b16 %v187
    %v287 = vunpack.c.l.b16 %v188
    %v288 = vunpack.c.h.b16 %v188
    %v289 = vunpack.c.l.b16 %v189
    %v290 = vunpack.c.h.b16 %v189
    %v291 = vpack.c.b16 %v229, %v227
    %v292 = vpack.c.b16 %v230, %v228
    %v293 = vpack.c.b16 %v233, %v231
    %v294 = vpack.c.b16 %v234, %v232
    %v295 = vpack.c.b16 %v237, %v235
    %v296 = vpack.c.b16 %v238, %v236
    %v297 = vpack.c.b16 %v241, %v239
    %v298 = vpack.c.b16 %v242, %v240
    %v299 = vpack.c.b16 %v245, %v243
    %v300 = vpack.c.b16 %v246, %v244
    %v301 = vpack.c.b16 %v249, %v247
    %v302 = vpack.c.b16 %v250, %v248
    %v303 = vpack.c.b16 %v253, %v251
    %v304 = vpack.c.b16 %v254, %v252
    %v305 = vpack.c.b16 %v257, %v255
    %v306 = vpack.c.b16 %v258, %v256
    %v307 = vpack.c.b16 %v261, %v259
    %v308 = vpack.c.b16 %v262, %v260
    %v309 = vpack.c.b16 %v265, %v263
    %v310 = vpack.c.b16 %v266, %v264
    %v311 = vpack.c.b16 %v269, %v267
    %v312 = vpack.c.b16 %v270, %v268
    %v313 = vpack.c.b16 %v273, %v271
    %v314 = vpack.c.b16 %v274, %v272
    %v315 = vpack.c.b16 %v277, %v275
    %v316 = vpack.c.b16 %v278, %v276
    %v317 = vpack.c.b16 %v281, %v279
    %v318 = vpack.c.b16 %v282, %v280
    %v319 = vpack.c.b16 %v285, %v283
    %v320 = vpack.c.b16 %v286, %v284
    %v321 = vpack.c.b16 %v289, %v287
    %v322 = vpack.c.b16 %v290, %v288
    %355 = vmatpush.bf16.msra.mxu0 %v305
    %356 = vmatpush.bf16.msra.mxu0 %v303
    %357 = vmatpush.bf16.msra.mxu0 %v301
    %358 = vmatpush.bf16.msra.mxu0 %v299
    %359 = vmatpush.bf16.msra.mxu0 %v297
    %360 = vmatpush.bf16.msra.mxu0 %v295
    %361 = vmatpush.bf16.msra.mxu0 %v293
    %362 = vmatpush.bf16.msra.mxu0 %v291
    %363 = vmatmul.bf16.gmra.mxu0 %v156
    %v364 = vpop.f32.mrf.mxu0
    %v365 = vadd.f32 %v191, %v364
    %v366 = vpop.f32.mrf.mxu0
    %367 = vdwg.mxu0
    %368 = vmatpush.bf16.msra.mxu0 %v321
    %369 = vmatpush.bf16.msra.mxu0 %v319
    %370 = vmatpush.bf16.msra.mxu0 %v317
    %371 = vmatpush.bf16.msra.mxu0 %v315
    %372 = vmatpush.bf16.msra.mxu0 %v313
    %373 = vmatpush.bf16.msra.mxu0 %v311
    %374 = vmatpush.bf16.msra.mxu0 %v309
    %375 = vmatpush.bf16.msra.mxu0 %v307
    %376 = vmatmul.bf16.gmra.mxu0 %v157
    %v377 = vpop.f32.mrf.mxu0
    %v378 = vadd.f32 %v365, %v377
    %v379 = vpop.f32.mrf.mxu0
    %380 = vdwg.mxu0
    %381 = vmatpush.bf16.msra.mxu0 %v306
    %382 = vmatpush.bf16.msra.mxu0 %v304
    %383 = vmatpush.bf16.msra.mxu0 %v302
    %384 = vmatpush.bf16.msra.mxu0 %v300
    %385 = vmatpush.bf16.msra.mxu0 %v298
    %386 = vmatpush.bf16.msra.mxu0 %v296
    %387 = vmatpush.bf16.msra.mxu0 %v294
    %388 = vmatpush.bf16.msra.mxu0 %v292
    %389 = vmatmul.bf16.gmra.mxu0 %v156
    %v390 = vpop.f32.mrf.mxu0
    %v391 = vadd.f32 %v192, %v390
    %v392 = vpop.f32.mrf.mxu0
    %393 = vdwg.mxu0
    %394 = vmatpush.bf16.msra.mxu0 %v322
    %395 = vmatpush.bf16.msra.mxu0 %v320
    %396 = vmatpush.bf16.msra.mxu0 %v318
    %397 = vmatpush.bf16.msra.mxu0 %v316
    %398 = vmatpush.bf16.msra.mxu0 %v314
    %399 = vmatpush.bf16.msra.mxu0 %v312
    %400 = vmatpush.bf16.msra.mxu0 %v310
    %401 = vmatpush.bf16.msra.mxu0 %v308
    %402 = vmatmul.bf16.gmra.mxu0 %v157
    %v403 = vpop.f32.mrf.mxu0
    %v404 = vadd.f32 %v391, %v403
    %v405 = vpop.f32.mrf.mxu0
    %406 = vdwg.mxu0
    %v407 = vmax.f32 %v378, 0.0
    %v408 = vmax.f32 %v404, 0.0
    %v409 = vpack.c.bf16 %v407, %v407
    %v410 = vpack.c.bf16 %v408, %v408
    %v411 = vld [vmem:[#allocation10] sm:$0xf]
    %v412 = vld [vmem:[#allocation10 + $0x4] sm:$0xf]
    %v413 = vld [vmem:[#allocation10 + $0x8] sm:$0xf]
    %v414 = vld [vmem:[#allocation10 + $0xc] sm:$0xf]
    %v415 = vld [vmem:[#allocation10 + $0x10] sm:$0xf]
    %v416 = vld [vmem:[#allocation10 + $0x14] sm:$0xf]
    %v417 = vld [vmem:[#allocation10 + $0x18] sm:$0xf]
    %v418 = vld [vmem:[#allocation10 + $0x1c] sm:$0xf]
    %v419 = vld [vmem:[#allocation10 + $0x20] sm:$0xf]
    %v420 = vld [vmem:[#allocation10 + $0x24] sm:$0xf]
    %v421 = vld [vmem:[#allocation10 + $0x28] sm:$0xf]
    %v422 = vld [vmem:[#allocation10 + $0x2c] sm:$0xf]
    %v423 = vld [vmem:[#allocation10 + $0x30] sm:$0xf]
    %v424 = vld [vmem:[#allocation10 + $0x34] sm:$0xf]
    %v425 = vld [vmem:[#allocation10 + $0x38] sm:$0xf]
    %v426 = vld [vmem:[#allocation10 + $0x3c] sm:$0xf]
    %v427 = vld [vmem:[#allocation10 + $0x40] sm:$0xf]
    %v428 = vld [vmem:[#allocation10 + $0x44] sm:$0xf]
    %v429 = vld [vmem:[#allocation10 + $0x48] sm:$0xf]
    %v430 = vld [vmem:[#allocation10 + $0x4c] sm:$0xf]
    %v431 = vld [vmem:[#allocation10 + $0x50] sm:$0xf]
    %v432 = vld [vmem:[#allocation10 + $0x54] sm:$0xf]
    %v433 = vld [vmem:[#allocation10 + $0x58] sm:$0xf]
    %v434 = vld [vmem:[#allocation10 + $0x5c] sm:$0xf]
    %v435 = vld [vmem:[#allocation10 + $0x60] sm:$0xf]
    %v436 = vld [vmem:[#allocation10 + $0x64] sm:$0xf]
    %v437 = vld [vmem:[#allocation10 + $0x68] sm:$0xf]
    %v438 = vld [vmem:[#allocation10 + $0x6c] sm:$0xf]
    %v439 = vld [vmem:[#allocation10 + $0x70] sm:$0xf]
    %v440 = vld [vmem:[#allocation10 + $0x74] sm:$0xf]
    %v441 = vld [vmem:[#allocation10 + $0x78] sm:$0xf]
    %v442 = vld [vmem:[#allocation10 + $0x7c] sm:$0xf]
    %v444 = vperm.slane %v104, 0
    %v478 = vunpack.c.l.b16 %v411
    %v479 = vunpack.c.l.b16 %v412
    %v480 = vunpack.c.l.b16 %v413
    %v481 = vunpack.c.l.b16 %v414
    %v482 = vunpack.c.l.b16 %v415
    %v483 = vunpack.c.l.b16 %v416
    %v484 = vunpack.c.l.b16 %v417
    %v485 = vunpack.c.l.b16 %v418
    %v486 = vunpack.c.l.b16 %v419
    %v487 = vunpack.c.l.b16 %v420
    %v488 = vunpack.c.l.b16 %v421
    %v489 = vunpack.c.l.b16 %v422
    %v490 = vunpack.c.l.b16 %v423
    %v491 = vunpack.c.l.b16 %v424
    %v492 = vunpack.c.l.b16 %v425
    %v493 = vunpack.c.l.b16 %v426
    %v494 = vunpack.c.l.b16 %v427
    %v495 = vunpack.c.l.b16 %v428
    %v496 = vunpack.c.l.b16 %v429
    %v497 = vunpack.c.l.b16 %v430
    %v498 = vunpack.c.l.b16 %v431
    %v499 = vunpack.c.l.b16 %v432
    %v500 = vunpack.c.l.b16 %v433
    %v501 = vunpack.c.l.b16 %v434
    %v502 = vunpack.c.l.b16 %v435
    %v503 = vunpack.c.l.b16 %v436
    %v504 = vunpack.c.l.b16 %v437
    %v505 = vunpack.c.l.b16 %v438
    %v506 = vunpack.c.l.b16 %v439
    %v507 = vunpack.c.l.b16 %v440
    %v508 = vunpack.c.l.b16 %v441
    %v509 = vunpack.c.l.b16 %v442
    %v510 = vpack.c.b16 %v479, %v478
    %v511 = vpack.c.b16 %v481, %v480
    %v512 = vpack.c.b16 %v483, %v482
    %v513 = vpack.c.b16 %v485, %v484
    %v514 = vpack.c.b16 %v487, %v486
    %v515 = vpack.c.b16 %v489, %v488
    %v516 = vpack.c.b16 %v491, %v490
    %v517 = vpack.c.b16 %v493, %v492
    %v518 = vpack.c.b16 %v495, %v494
    %v519 = vpack.c.b16 %v497, %v496
    %v520 = vpack.c.b16 %v499, %v498
    %v521 = vpack.c.b16 %v501, %v500
    %v522 = vpack.c.b16 %v503, %v502
    %v523 = vpack.c.b16 %v505, %v504
    %v524 = vpack.c.b16 %v507, %v506
    %v525 = vpack.c.b16 %v509, %v508
    %542 = vmatpush.bf16.msra.mxu0 %v517
    %543 = vmatpush.bf16.msra.mxu0 %v516
    %544 = vmatpush.bf16.msra.mxu0 %v515
    %545 = vmatpush.bf16.msra.mxu0 %v514
    %546 = vmatpush.bf16.msra.mxu0 %v513
    %547 = vmatpush.bf16.msra.mxu0 %v512
    %548 = vmatpush.bf16.msra.mxu0 %v511
    %549 = vmatpush.bf16.msra.mxu0 %v510
    %550 = vmatmul.bf16.gmra.mxu0 %v409
    %v551 = vpop.f32.mrf.mxu0
    %v552 = vadd.f32 %v444, %v551
    %v553 = vpop.f32.mrf.mxu0
    %554 = vdwg.mxu0
    %555 = vmatpush.bf16.msra.mxu0 %v525
    %556 = vmatpush.bf16.msra.mxu0 %v524
    %557 = vmatpush.bf16.msra.mxu0 %v523
    %558 = vmatpush.bf16.msra.mxu0 %v522
    %559 = vmatpush.bf16.msra.mxu0 %v521
    %560 = vmatpush.bf16.msra.mxu0 %v520
    %561 = vmatpush.bf16.msra.mxu0 %v519
    %562 = vmatpush.bf16.msra.mxu0 %v518
    %563 = vmatmul.bf16.gmra.mxu0 %v410
    %v564 = vpop.f32.mrf.mxu0
    %v565 = vadd.f32 %v552, %v564
    %v566 = vpop.f32.mrf.mxu0
    %567 = vdwg.mxu0
    %568 = vst [vmem:[#allocation11] sm:$0xff] %v565
    // Predicated region
    $region50: #{tpu_custom_call.1} parent=1 // pred_check
      _
    $region51: #{tpu_custom_call.1} parent=1 // pred_check_branch
      %570 = sbr.rel (0) target = $region53
    $region52: #{tpu_custom_call.1} parent=1 // pred_region
      %572 = vsyncadd [#allocation4], 0
      %s574 = sshll.u32 [#allocation11], 4
      %s575 = int_to_ptr.vmem [resolvable:$true] %s574
      %s576 = sshll.u32 %s7, 4
      %s577 = int_to_ptr.hbm [resolvable:$true] %s576
      %579 = dma.vmem_to_hbm [thread:$0]  %s575, 128, %s577, [#allocation4]
    $region53: #{tpu_custom_call.1} parent=1 // pred_fallthru
      _
    // Predicated region
    $region54: #{tpu_custom_call.1} parent=1 // pred_check
      _
    $region55: #{tpu_custom_call.1} parent=1 // pred_check_branch
      %581 = sbr.rel (0) target = $region57
    $region56: #{tpu_custom_call.1} parent=1 // pred_region
      %583 = dma.done [#allocation4], 128
    $region57: #{tpu_custom_call.1} parent=1 // pred_fallthru
      _
    %584 = vsyncpa [#allocation3], 1
    %585 = vsyncpa [#allocation6], 1
    %586 = vsyncpa [#allocation9], 1
    %587 = vsyncpa [#allocation4], 1

</llo_original>
